<compile_context>
chip_gen: v5e
topology: v5e:2x2
jax: 0.10.0
libtpu: 0.0.40
codegen_flags: <defaults>
</compile_context>

<pallas_src>
import jax
import jax.numpy as jnp
import numpy as np
from jax.experimental import pallas as pl
from jax.experimental.pallas import tpu as pltpu

_HEADROOM_BYTES = 6 << 20  # leave room for Mosaic internal scratch


# ---------------------------------------------------------------------------
# Kernels
# ---------------------------------------------------------------------------

def _sae_resident_kernel(x_ref, w_enc_ref, b_enc_ref, w_dec_ref, b_dec_ref,
                         recon_ref, acts_ref, l2_ref, l1_ref):
    """One batch tile; both weight matrices fully resident in VMEM."""
    w_dtype = w_enc_ref.dtype
    x = x_ref[...]                                     # (TB, A)
    b_dec_f32 = b_dec_ref[...].astype(jnp.float32)     # (1, A)

    # Explicit cast to the weight dtype: bf16 params get a bf16 x bf16 MXU
    # matmul even when x is f32 (mixed f32 x bf16 would fall off the fast path).
    x_cent = (x.astype(jnp.float32) - b_dec_f32).astype(w_dtype)

    # acts = relu(x_cent @ W_enc + b_enc) -- MXU matmul, f32 accumulation.
    pre = jnp.dot(x_cent, w_enc_ref[...], preferred_element_type=jnp.float32)
    acts_f32 = jnp.maximum(pre + b_enc_ref[...].astype(jnp.float32), 0.0)
    acts_ref[...] = acts_f32.astype(acts_ref.dtype)

    # x_reconstruct = acts @ W_dec + b_dec
    recon_f32 = jnp.dot(acts_f32.astype(w_dtype), w_dec_ref[...],
                        preferred_element_type=jnp.float32) + b_dec_f32
    recon_ref[...] = recon_f32.astype(recon_ref.dtype)

    # Per-tile loss partial sums; batch mean / l1_coeff applied in the wrapper
    # so the batch grid axis stays "parallel".  Lane-dense (8,128) stores.
    diff = recon_f32 - x.astype(jnp.float32)
    l2_ref[...] = jnp.full((1, 8, 128), jnp.sum(diff * diff), jnp.float32)
    l1_ref[...] = jnp.full((1, 8, 128), jnp.sum(jnp.abs(acts_f32)), jnp.float32)


def _sae_streamed_kernel(x_ref, w_enc_ref, b_enc_ref, w_dec_ref, b_dec_ref,
                         recon_ref, acts_ref, l2_ref, l1_ref, recon_acc):
    """One (batch tile, hidden tile) step; W_enc / W_dec stream over H."""
    k = pl.program_id(1)
    w_dtype = w_enc_ref.dtype

    @pl.when(k == 0)
    def _():
        recon_acc[...] = jnp.zeros_like(recon_acc)
        l1_ref[...] = jnp.zeros_like(l1_ref)

    x = x_ref[...]                                     # (TB, A)  (resident over k)
    b_dec_f32 = b_dec_ref[...].astype(jnp.float32)     # (1, A)
    x_cent = (x.astype(jnp.float32) - b_dec_f32).astype(w_dtype)

    # Hidden-tile slice of the encoder: (TB, TH), f32 accumulation.
    pre = jnp.dot(x_cent, w_enc_ref[...], preferred_element_type=jnp.float32)
    acts_f32 = jnp.maximum(pre + b_enc_ref[...].astype(jnp.float32), 0.0)
    acts_ref[...] = acts_f32.astype(acts_ref.dtype)

    # Partial decoder contribution and l1 partial, accumulated across k.
    recon_acc[...] += jnp.dot(acts_f32.astype(w_dtype), w_dec_ref[...],
                              preferred_element_type=jnp.float32)
    l1_ref[...] += jnp.full((1, 8, 128), jnp.sum(jnp.abs(acts_f32)), jnp.float32)

    @pl.when(k == pl.num_programs(1) - 1)
    def _():
        recon_f32 = recon_acc[...] + b_dec_f32
        recon_ref[...] = recon_f32.astype(recon_ref.dtype)
        diff = recon_f32 - x.astype(jnp.float32)
        l2_ref[...] = jnp.full((1, 8, 128), jnp.sum(diff * diff), jnp.float32)


# ---------------------------------------------------------------------------
# Sizing helpers
# ---------------------------------------------------------------------------

def _itemsize(dt):
    return jnp.dtype(dt).itemsize


def _device_vmem_bytes():
    """Per-core VMEM capacity (v5e/v6e: 128 MiB, v7x: 64 MiB)."""
    try:
        return int(pltpu.get_tpu_info().vmem_capacity_bytes)
    except Exception:
        return 64 << 20  # conservative: assume v7x-sized VMEM


def _preferred_batch_tile():
    """256 rows matches the 256x256 MXU on v6e/v7x; 128 is plenty on v5e."""
    try:
        kind = jax.devices()[0].device_kind.lower()
    except Exception:
        kind = ""
    return 128 if "v5" in kind else 256


def _resident_vmem_bytes(tb, A, H, x_isz, w_isz, recon_isz, acts_isz):
    # Weights/biases counted double-buffered so the estimate also covers the
    # fallback path where pl.Buffered(1) is unavailable.
    weights = 2 * (A * H + H * A + H + A) * w_isz
    streams = 2 * (tb * A * x_isz + tb * A * recon_isz + tb * H * acts_isz) \
              + 2 * 2 * 8 * 128 * 4
    temps = tb * (2 * H + 3 * A) * 4   # f32 pre/acts, x_cent, recon, diff
    return weights + streams + temps


def _streamed_vmem_bytes(tb, th, A, x_isz, w_isz, recon_isz, acts_isz):
    weights = 2 * (A * th + th * A + th + A) * w_isz   # per-H-tile, double-buffered
    streams = 2 * (tb * A * x_isz + tb * A * recon_isz + tb * th * acts_isz) \
              + 2 * 2 * 8 * 128 * 4
    scratch = tb * A * 4                               # f32 recon accumulator
    temps = tb * (2 * th + 3 * A) * 4
    return weights + streams + scratch + temps


def _pick_batch_tile(batch, fits):
    """Largest batch tile (multiple of 8) dividing the batch that fits VMEM and
    does not exceed the per-generation preference (256 v6e/v7x, 128 v5e)."""
    pref = _preferred_batch_tile()
    fallback = None
    for tb in (256, 128, 64, 32, 16, 8):
        if tb > pref or batch % tb:
            continue
        if fallback is None:
            fallback = tb
        if fits(tb):
            return tb
    # Ragged / tiny batch: single tile (legal: block equals the full array dim).
    return fallback if fallback is not None else batch


# ---------------------------------------------------------------------------
# pallas_call builders
# ---------------------------------------------------------------------------

def _run_resident(x, w_enc, b_enc_row, w_dec, b_dec_row, *,
                  nb, block_b, vmem_limit, cost, pin_weights):
    B, A = x.shape
    H = w_enc.shape[1]
    w_mode = pl.Buffered(1) if pin_weights else None
    return pl.pallas_call(
        _sae_resident_kernel,
        grid=(nb,),
        in_specs=[
            pl.BlockSpec((block_b, A), lambda i: (i, 0)),                       # x
            pl.BlockSpec((A, H), lambda i: (0, 0), pipeline_mode=w_mode),       # W_enc
            pl.BlockSpec((1, H), lambda i: (0, 0), pipeline_mode=w_mode),       # b_enc
            pl.BlockSpec((H, A), lambda i: (0, 0), pipeline_mode=w_mode),       # W_dec
            pl.BlockSpec((1, A), lambda i: (0, 0), pipeline_mode=w_mode),       # b_dec
        ],
        out_specs=(
            pl.BlockSpec((block_b, A), lambda i: (i, 0)),        # x_reconstruct
            pl.BlockSpec((block_b, H), lambda i: (i, 0)),        # acts
            pl.BlockSpec((1, 8, 128), lambda i: (i, 0, 0)),      # l2 partials
            pl.BlockSpec((1, 8, 128), lambda i: (i, 0, 0)),      # l1 partials
        ),
        out_shape=(
            jax.ShapeDtypeStruct((B, A), w_dec.dtype),
            jax.ShapeDtypeStruct((B, H), w_enc.dtype),
            jax.ShapeDtypeStruct((nb, 8, 128), jnp.float32),
            jax.ShapeDtypeStruct((nb, 8, 128), jnp.float32),
        ),
        compiler_params=pltpu.CompilerParams(
            dimension_semantics=("parallel",),
            vmem_limit_bytes=vmem_limit),
        cost_estimate=cost,
    )(x, w_enc, b_enc_row, w_dec, b_dec_row)


def _run_streamed(x, w_enc, b_enc_row, w_dec, b_dec_row, *,
                  nb, block_b, nh, block_h, vmem_limit, cost, pin_weights):
    B, A = x.shape
    H = w_enc.shape[1]
    c_mode = pl.Buffered(1) if pin_weights else None   # b_dec constant over the grid
    return pl.pallas_call(
        _sae_streamed_kernel,
        grid=(nb, nh),
        in_specs=[
            pl.BlockSpec((block_b, A), lambda i, k: (i, 0)),                    # x
            pl.BlockSpec((A, block_h), lambda i, k: (0, k)),                    # W_enc cols
            pl.BlockSpec((1, block_h), lambda i, k: (0, k)),                    # b_enc
            pl.BlockSpec((block_h, A), lambda i, k: (k, 0)),                    # W_dec rows
            pl.BlockSpec((1, A), lambda i, k: (0, 0), pipeline_mode=c_mode),    # b_dec
        ],
        out_specs=(
            pl.BlockSpec((block_b, A), lambda i, k: (i, 0)),      # recon (revisited over k)
            pl.BlockSpec((block_b, block_h), lambda i, k: (i, k)),
            pl.BlockSpec((1, 8, 128), lambda i, k: (i, 0, 0)),
            pl.BlockSpec((1, 8, 128), lambda i, k: (i, 0, 0)),    # l1 (accumulated over k)
        ),
        out_shape=(
            jax.ShapeDtypeStruct((B, A), w_dec.dtype),
            jax.ShapeDtypeStruct((B, H), w_enc.dtype),
            jax.ShapeDtypeStruct((nb, 8, 128), jnp.float32),
            jax.ShapeDtypeStruct((nb, 8, 128), jnp.float32),
        ),
        scratch_shapes=[pltpu.VMEM((block_b, A), jnp.float32)],   # recon accumulator
        compiler_params=pltpu.CompilerParams(
            dimension_semantics=("parallel", "arbitrary"),
            vmem_limit_bytes=vmem_limit),
        cost_estimate=cost,
    )(x, w_enc, b_enc_row, w_dec, b_dec_row)


# ---------------------------------------------------------------------------
# Public wrapper
# ---------------------------------------------------------------------------

def sae_forward(x, w_enc, b_enc, w_dec, b_dec, l1_coeff, *,
                block_b=None, block_h=None, force_stream=False):
    """Returns (loss, x_reconstruct, acts, l2_loss, l1_loss) like the nn.Module."""
    B, A = x.shape
    H = w_enc.shape[1]

    x_isz = _itemsize(x.dtype)
    w_isz = _itemsize(w_enc.dtype)
    recon_isz = _itemsize(w_dec.dtype)
    acts_isz = _itemsize(w_enc.dtype)

    budget = _device_vmem_bytes() - _HEADROOM_BYTES

    # Candidate hidden tiles (lane-aligned divisors of H), largest first.
    th_cands = [th for th in (2048, 1024, 512, 256, 128) if th < H and H % th == 0]

    def resident_bytes(tb):
        return _resident_vmem_bytes(tb, A, H, x_isz, w_isz, recon_isz, acts_isz)

    def streamed_bytes(tb, th):
        return _streamed_vmem_bytes(tb, th, A, x_isz, w_isz, recon_isz, acts_isz)

    def fits(tb):
        if resident_bytes(tb) <= budget:
            return True
        return bool(th_cands) and streamed_bytes(tb, th_cands[-1]) <= budget

    if block_b is None:
        block_b = _pick_batch_tile(B, fits)
    assert B % block_b == 0, "batch must be divisible by the batch tile"
    nb = B // block_b

    # Path selection: resident weights if they fit; otherwise stream over H.
    use_stream = force_stream or (block_h is not None)
    if not use_stream and th_cands and resident_bytes(block_b) > budget:
        use_stream = True
    if use_stream and block_h is None:
        block_h = next((th for th in th_cands if streamed_bytes(block_b, th) <= budget),
                       th_cands[-1] if th_cands else H)
    if use_stream:
        assert H % block_h == 0, "d_hidden must be divisible by the hidden tile"
        nh = H // block_h
        est = streamed_bytes(block_b, block_h)
    else:
        nh = None
        est = resident_bytes(block_b)

    vmem_limit = int(min(max(est + (4 << 20), 16 << 20), budget))

    b_enc_row = b_enc.reshape(1, H)
    b_dec_row = b_dec.reshape(1, A)

    asz = lambda a: a.size * jnp.dtype(a.dtype).itemsize
    bytes_accessed = (asz(x) + asz(w_enc) + asz(w_dec) + asz(b_enc) + asz(b_dec)
                      + B * A * recon_isz + B * H * acts_isz + 2 * nb * 8 * 128 * 4)
    cost = pl.CostEstimate(flops=4 * B * A * H, transcendentals=0,
                           bytes_accessed=int(bytes_accessed))

    def run(pin_weights):
        if use_stream:
            return _run_streamed(x, w_enc, b_enc_row, w_dec, b_dec_row,
                                 nb=nb, block_b=block_b, nh=nh, block_h=block_h,
                                 vmem_limit=vmem_limit, cost=cost,
                                 pin_weights=pin_weights)
        return _run_resident(x, w_enc, b_enc_row, w_dec, b_dec_row,
                             nb=nb, block_b=block_b,
                             vmem_limit=vmem_limit, cost=cost,
                             pin_weights=pin_weights)

    try:
        outs = jax.block_until_ready(run(pin_weights=True))
    except Exception:
        # Installed jaxlib may reject single-buffered pipeline_mode; correctness
        # is identical with default double-buffering (VMEM estimate covers it).
        outs = run(pin_weights=False)
    recon, acts, l2p, l1p = outs

    # Finalize losses in the wrapper: keeps the batch axis "parallel" and keeps
    # l1_coeff out of the kernel so sweeping it never recompiles.
    l2_loss = jnp.sum(l2p[:, 0, 0]) / B
    l1_loss = jnp.asarray(l1_coeff, jnp.float32) * jnp.sum(l1p[:, 0, 0])
    loss = l2_loss + l1_loss
    return loss, recon, acts, l2_loss, l1_loss


def init_params(key, act_size, d_hidden, dtype=jnp.float32):
    """Deterministic kaiming-uniform-style init mirroring the module shapes."""
    k_enc, k_dec = jax.random.split(key)
    bound_enc = float(np.sqrt(6.0 / d_hidden))
    bound_dec = float(np.sqrt(6.0 / act_size))
    w_enc = jax.random.uniform(k_enc, (act_size, d_hidden), dtype,
                               minval=-bound_enc, maxval=bound_enc)
    w_dec = jax.random.uniform(k_dec, (d_hidden, act_size), dtype,
                               minval=-bound_dec, maxval=bound_dec)
    # W_dec rows normalized to unit norm (dim=-1), as in __init__.
    w_dec = w_dec / jnp.linalg.norm(w_dec, axis=-1, keepdims=True)
    b_enc = jnp.zeros((d_hidden,), dtype)
    b_dec = jnp.zeros((act_size,), dtype)
    return w_enc, b_enc, w_dec, b_dec


if __name__ == "__main__":
    # cfg-equivalent: act_size=128, dict_size=256, l1_coeff=1e-3, enc_dtype=fp32
    batch, act_size, d_hidden = 8, 128, 256
    l1_coeff = 1e-3

    key = jax.random.PRNGKey(0)
    k_x, k_p = jax.random.split(key)
    x = jax.random.normal(k_x, (batch, act_size), jnp.float32)
    w_enc, b_enc, w_dec, b_dec = init_params(k_p, act_size, d_hidden)

    # Pure-JAX reference.
    x_cent = x - b_dec
    acts_ref = jnp.maximum(x_cent @ w_enc + b_enc, 0.0)
    recon_ref = acts_ref @ w_dec + b_dec
    l2_ref = jnp.mean(jnp.sum((recon_ref - x) ** 2, axis=-1))
    l1_ref = l1_coeff * jnp.sum(jnp.abs(acts_ref))

    def check(outs):
        loss, recon, acts, l2_loss, l1_loss = jax.block_until_ready(outs)
        assert np.allclose(np.asarray(recon), np.asarray(recon_ref), rtol=1e-5, atol=1e-5)
        assert np.allclose(np.asarray(acts), np.asarray(acts_ref), rtol=1e-5, atol=1e-5)
        assert np.allclose(float(l2_loss), float(l2_ref), rtol=1e-4, atol=1e-5)
        assert np.allclose(float(l1_loss), float(l1_ref), rtol=1e-4, atol=1e-5)
        assert np.allclose(float(loss), float(l2_ref + l1_ref), rtol=1e-4, atol=1e-5)

    # Resident-weights path (default for these shapes).
    check(sae_forward(x, w_enc, b_enc, w_dec, b_dec, l1_coeff))

    # H-streamed path (what large dict sizes use on v7x's 64 MiB VMEM); forced
    # here so the accumulator / reduction-axis structure is validated too.
    check(sae_forward(x, w_enc, b_enc, w_dec, b_dec, l1_coeff,
                      force_stream=True, block_h=128))

    print("KERNEL_OK")
</pallas_src>

<mosaic_0001>
module attributes {stable_mosaic.version = 11 : i64} {
  func.func @_sae_resident_kernel(%arg0: i32, %arg1: memref<8x128xf32, #tpu.memory_space<vmem>>, %arg2: memref<128x256xf32, #tpu.memory_space<vmem>>, %arg3: memref<1x256xf32, #tpu.memory_space<vmem>>, %arg4: memref<256x128xf32, #tpu.memory_space<vmem>>, %arg5: memref<1x128xf32, #tpu.memory_space<vmem>>, %arg6: memref<8x128xf32, #tpu.memory_space<vmem>>, %arg7: memref<8x256xf32, #tpu.memory_space<vmem>>, %arg8: memref<1x8x128xf32, #tpu.memory_space<vmem>>, %arg9: memref<1x8x128xf32, #tpu.memory_space<vmem>>) attributes {dimension_semantics = [#tpu.dimension_semantics<parallel>], iteration_bounds = array<i64: 1>, scalar_prefetch = 0 : i64, scratch_operands = 0 : i64, tpu.core_type = #tpu.core_type<tc>, window_params = [{transform_indices = @transform_0, window_bounds = array<i64: 8, 128>}, {pipeline_mode = #tpu.pipeline_mode<synchronous>, transform_indices = @transform_1, window_bounds = array<i64: 128, 256>}, {pipeline_mode = #tpu.pipeline_mode<synchronous>, transform_indices = @transform_2, window_bounds = array<i64: 1, 256>}, {pipeline_mode = #tpu.pipeline_mode<synchronous>, transform_indices = @transform_3, window_bounds = array<i64: 256, 128>}, {pipeline_mode = #tpu.pipeline_mode<synchronous>, transform_indices = @transform_4, window_bounds = array<i64: 1, 128>}, {transform_indices = @transform_5, window_bounds = array<i64: 8, 128>}, {transform_indices = @transform_6, window_bounds = array<i64: 8, 256>}, {transform_indices = @transform_7, window_bounds = array<i64: 1, 8, 128>}, {transform_indices = @transform_8, window_bounds = array<i64: 1, 8, 128>}]} {
    %c0 = arith.constant 0 : index
    %c0_0 = arith.constant 0 : index
    %0 = vector.load %arg1[%c0, %c0_0] : memref<8x128xf32, #tpu.memory_space<vmem>>, vector<8x128xf32>
    %c0_1 = arith.constant 0 : index
    %c0_2 = arith.constant 0 : index
    %1 = vector.load %arg5[%c0_1, %c0_2] : memref<1x128xf32, #tpu.memory_space<vmem>>, vector<1x128xf32>
    %2 = vector.broadcast %1 : vector<1x128xf32> to vector<8x128xf32>
    %3 = arith.subf %0, %2 : vector<8x128xf32>
    %c0_3 = arith.constant 0 : index
    %c0_4 = arith.constant 0 : index
    %4 = vector.load %arg2[%c0_3, %c0_4] : memref<128x256xf32, #tpu.memory_space<vmem>>, vector<128x256xf32>
    %cst = arith.constant dense<0.000000e+00> : vector<8x256xf32>
    %5 = tpu.matmul %3, %4, %cst {dimension_numbers = #tpu.dot_dimension_numbers<[1], [0], [0], [1], [0, 0, 1, 1], [], []>} : vector<8x128xf32>, vector<128x256xf32>, vector<8x256xf32> -> vector<8x256xf32>
    %c0_5 = arith.constant 0 : index
    %c0_6 = arith.constant 0 : index
    %6 = vector.load %arg3[%c0_5, %c0_6] : memref<1x256xf32, #tpu.memory_space<vmem>>, vector<1x256xf32>
    %7 = vector.broadcast %6 : vector<1x256xf32> to vector<8x256xf32>
    %8 = arith.addf %5, %7 : vector<8x256xf32>
    %cst_7 = arith.constant 0.000000e+00 : f32
    %9 = vector.broadcast %cst_7 : f32 to vector<8x256xf32>
    %10 = arith.maximumf %8, %9 : vector<8x256xf32>
    %c0_8 = arith.constant 0 : index
    %c0_9 = arith.constant 0 : index
    %11 = vector.load %arg7[%c0_8, %c0_9] : memref<8x256xf32, #tpu.memory_space<vmem>>, vector<8x256xf32>
    tpu.vector_store %arg7[%c0_8, %c0_9], %10 {strides = array<i32>} : memref<8x256xf32, #tpu.memory_space<vmem>>, vector<8x256xf32>,
    %c0_10 = arith.constant 0 : index
    %c0_11 = arith.constant 0 : index
    %12 = vector.load %arg4[%c0_10, %c0_11] : memref<256x128xf32, #tpu.memory_space<vmem>>, vector<256x128xf32>
    %cst_12 = arith.constant dense<0.000000e+00> : vector<8x128xf32>
    %13 = tpu.matmul %10, %12, %cst_12 {dimension_numbers = #tpu.dot_dimension_numbers<[1], [0], [0], [1], [0, 0, 1, 1], [], []>} : vector<8x256xf32>, vector<256x128xf32>, vector<8x128xf32> -> vector<8x128xf32>
    %14 = vector.broadcast %1 : vector<1x128xf32> to vector<8x128xf32>
    %15 = arith.addf %13, %14 : vector<8x128xf32>
    %c0_13 = arith.constant 0 : index
    %c0_14 = arith.constant 0 : index
    %16 = vector.load %arg6[%c0_13, %c0_14] : memref<8x128xf32, #tpu.memory_space<vmem>>, vector<8x128xf32>
    tpu.vector_store %arg6[%c0_13, %c0_14], %15 {strides = array<i32>} : memref<8x128xf32, #tpu.memory_space<vmem>>, vector<8x128xf32>,
    %17 = arith.subf %15, %0 : vector<8x128xf32>
    %18 = arith.mulf %17, %17 : vector<8x128xf32>
    %19 = vector.shape_cast %18 : vector<8x128xf32> to vector<1x8x128xf32>
    %cst_15 = arith.constant dense<0.000000e+00> : vector<1xf32>
    %20 = vector.multi_reduction <add>, %19, %cst_15 [1, 2] : vector<1x8x128xf32> to vector<1xf32>
    %21 = vector.shape_cast %20 : vector<1xf32> to vector<1x1x1xf32>
    %22 = vector.extract %21[0, 0, 0] : f32 from vector<1x1x1xf32>
    %23 = vector.broadcast %22 : f32 to vector<1x8x128xf32>
    %c0_16 = arith.constant 0 : index
    %c0_17 = arith.constant 0 : index
    %c0_18 = arith.constant 0 : index
    %24 = vector.load %arg8[%c0_16, %c0_17, %c0_18] : memref<1x8x128xf32, #tpu.memory_space<vmem>>, vector<1x8x128xf32>
    tpu.vector_store %arg8[%c0_16, %c0_17, %c0_18], %23 {strides = array<i32>} : memref<1x8x128xf32, #tpu.memory_space<vmem>>, vector<1x8x128xf32>,
    %25 = math.absf %10 : vector<8x256xf32>
    %26 = vector.shape_cast %25 : vector<8x256xf32> to vector<1x8x256xf32>
    %cst_19 = arith.constant dense<0.000000e+00> : vector<1xf32>
    %27 = vector.multi_reduction <add>, %26, %cst_19 [1, 2] : vector<1x8x256xf32> to vector<1xf32>
    %28 = vector.shape_cast %27 : vector<1xf32> to vector<1x1x1xf32>
    %29 = vector.extract %28[0, 0, 0] : f32 from vector<1x1x1xf32>
    %30 = vector.broadcast %29 : f32 to vector<1x8x128xf32>
    %c0_20 = arith.constant 0 : index
    %c0_21 = arith.constant 0 : index
    %c0_22 = arith.constant 0 : index
    %31 = vector.load %arg9[%c0_20, %c0_21, %c0_22] : memref<1x8x128xf32, #tpu.memory_space<vmem>>, vector<1x8x128xf32>
    tpu.vector_store %arg9[%c0_20, %c0_21, %c0_22], %30 {strides = array<i32>} : memref<1x8x128xf32, #tpu.memory_space<vmem>>, vector<1x8x128xf32>,
    return
  }
  func.func @transform_0(%arg0: i32) -> (i32, i32) {
    %c0_i32 = arith.constant 0 : i32
    %c0_i32_0 = arith.constant 0 : i32
    return %arg0, %c0_i32 : i32, i32
  }
  func.func @transform_1(%arg0: i32) -> (i32, i32) {
    %c0_i32 = arith.constant 0 : i32
    %c0_i32_0 = arith.constant 0 : i32
    %c0_i32_1 = arith.constant 0 : i32
    return %c0_i32, %c0_i32_0 : i32, i32
  }
  func.func @transform_2(%arg0: i32) -> (i32, i32) {
    %c0_i32 = arith.constant 0 : i32
    %c0_i32_0 = arith.constant 0 : i32
    %c0_i32_1 = arith.constant 0 : i32
    return %c0_i32, %c0_i32_0 : i32, i32
  }
  func.func @transform_3(%arg0: i32) -> (i32, i32) {
    %c0_i32 = arith.constant 0 : i32
    %c0_i32_0 = arith.constant 0 : i32
    %c0_i32_1 = arith.constant 0 : i32
    return %c0_i32, %c0_i32_0 : i32, i32
  }
  func.func @transform_4(%arg0: i32) -> (i32, i32) {
    %c0_i32 = arith.constant 0 : i32
    %c0_i32_0 = arith.constant 0 : i32
    %c0_i32_1 = arith.constant 0 : i32
    return %c0_i32, %c0_i32_0 : i32, i32
  }
  func.func @transform_5(%arg0: i32) -> (i32, i32) {
    %c0_i32 = arith.constant 0 : i32
    %c0_i32_0 = arith.constant 0 : i32
    return %arg0, %c0_i32 : i32, i32
  }
  func.func @transform_6(%arg0: i32) -> (i32, i32) {
    %c0_i32 = arith.constant 0 : i32
    %c0_i32_0 = arith.constant 0 : i32
    return %arg0, %c0_i32 : i32, i32
  }
  func.func @transform_7(%arg0: i32) -> (i32, i32, i32) {
    %c0_i32 = arith.constant 0 : i32
    %c0_i32_0 = arith.constant 0 : i32
    %c0_i32_1 = arith.constant 0 : i32
    return %arg0, %c0_i32, %c0_i32_0 : i32, i32, i32
  }
  func.func @transform_8(%arg0: i32) -> (i32, i32, i32) {
    %c0_i32 = arith.constant 0 : i32
    %c0_i32_0 = arith.constant 0 : i32
    %c0_i32_1 = arith.constant 0 : i32
    return %arg0, %c0_i32, %c0_i32_0 : i32, i32, i32
  }
}

module attributes {stable_mosaic.version = 11 : i64} {
  func.func @_sae_resident_kernel(%arg0: i32, %arg1: memref<8x128xf32, #tpu.memory_space<vmem>>, %arg2: memref<128x256xf32, #tpu.memory_space<vmem>>, %arg3: memref<1x256xf32, #tpu.memory_space<vmem>>, %arg4: memref<256x128xf32, #tpu.memory_space<vmem>>, %arg5: memref<1x128xf32, #tpu.memory_space<vmem>>, %arg6: memref<8x128xf32, #tpu.memory_space<vmem>>, %arg7: memref<8x256xf32, #tpu.memory_space<vmem>>, %arg8: memref<1x8x128xf32, #tpu.memory_space<vmem>>, %arg9: memref<1x8x128xf32, #tpu.memory_space<vmem>>) attributes {dimension_semantics = [#tpu.dimension_semantics<parallel>], iteration_bounds = array<i64: 1>, scalar_prefetch = 0 : i64, scratch_operands = 0 : i64, tpu.core_type = #tpu.core_type<tc>, window_params = [{transform_indices = @transform_0, window_bounds = array<i64: 8, 128>}, {pipeline_mode = #tpu.pipeline_mode<synchronous>, transform_indices = @transform_1, window_bounds = array<i64: 128, 256>}, {pipeline_mode = #tpu.pipeline_mode<synchronous>, transform_indices = @transform_2, window_bounds = array<i64: 1, 256>}, {pipeline_mode = #tpu.pipeline_mode<synchronous>, transform_indices = @transform_3, window_bounds = array<i64: 256, 128>}, {pipeline_mode = #tpu.pipeline_mode<synchronous>, transform_indices = @transform_4, window_bounds = array<i64: 1, 128>}, {transform_indices = @transform_5, window_bounds = array<i64: 8, 128>}, {transform_indices = @transform_6, window_bounds = array<i64: 8, 256>}, {transform_indices = @transform_7, window_bounds = array<i64: 1, 8, 128>}, {transform_indices = @transform_8, window_bounds = array<i64: 1, 8, 128>}]} {
    %c0 = arith.constant 0 : index
    %c0_0 = arith.constant 0 : index
    %0 = vector.load %arg1[%c0, %c0_0] : memref<8x128xf32, #tpu.memory_space<vmem>>, vector<8x128xf32>
    %c0_1 = arith.constant 0 : index
    %c0_2 = arith.constant 0 : index
    %1 = vector.load %arg5[%c0_1, %c0_2] : memref<1x128xf32, #tpu.memory_space<vmem>>, vector<1x128xf32>
    %2 = vector.broadcast %1 : vector<1x128xf32> to vector<8x128xf32>
    %3 = arith.subf %0, %2 : vector<8x128xf32>
    %c0_3 = arith.constant 0 : index
    %c0_4 = arith.constant 0 : index
    %4 = vector.load %arg2[%c0_3, %c0_4] : memref<128x256xf32, #tpu.memory_space<vmem>>, vector<128x256xf32>
    %cst = arith.constant dense<0.000000e+00> : vector<8x256xf32>
    %5 = tpu.matmul %3, %4, %cst {dimension_numbers = #tpu.dot_dimension_numbers<[1], [0], [0], [1], [0, 0, 1, 1], [], []>} : vector<8x128xf32>, vector<128x256xf32>, vector<8x256xf32> -> vector<8x256xf32>
    %c0_5 = arith.constant 0 : index
    %c0_6 = arith.constant 0 : index
    %6 = vector.load %arg3[%c0_5, %c0_6] : memref<1x256xf32, #tpu.memory_space<vmem>>, vector<1x256xf32>
    %7 = vector.broadcast %6 : vector<1x256xf32> to vector<8x256xf32>
    %8 = arith.addf %5, %7 : vector<8x256xf32>
    %cst_7 = arith.constant 0.000000e+00 : f32
    %9 = vector.broadcast %cst_7 : f32 to vector<8x256xf32>
    %10 = arith.maximumf %8, %9 : vector<8x256xf32>
    %c0_8 = arith.constant 0 : index
    %c0_9 = arith.constant 0 : index
    %11 = vector.load %arg7[%c0_8, %c0_9] : memref<8x256xf32, #tpu.memory_space<vmem>>, vector<8x256xf32>
    tpu.vector_store %arg7[%c0_8, %c0_9], %10 {strides = array<i32>} : memref<8x256xf32, #tpu.memory_space<vmem>>, vector<8x256xf32>,
    %c0_10 = arith.constant 0 : index
    %c0_11 = arith.constant 0 : index
    %12 = vector.load %arg4[%c0_10, %c0_11] : memref<256x128xf32, #tpu.memory_space<vmem>>, vector<256x128xf32>
    %cst_12 = arith.constant dense<0.000000e+00> : vector<8x128xf32>
    %13 = tpu.matmul %10, %12, %cst_12 {dimension_numbers = #tpu.dot_dimension_numbers<[1], [0], [0], [1], [0, 0, 1, 1], [], []>} : vector<8x256xf32>, vector<256x128xf32>, vector<8x128xf32> -> vector<8x128xf32>
    %14 = vector.broadcast %1 : vector<1x128xf32> to vector<8x128xf32>
    %15 = arith.addf %13, %14 : vector<8x128xf32>
    %c0_13 = arith.constant 0 : index
    %c0_14 = arith.constant 0 : index
    %16 = vector.load %arg6[%c0_13, %c0_14] : memref<8x128xf32, #tpu.memory_space<vmem>>, vector<8x128xf32>
    tpu.vector_store %arg6[%c0_13, %c0_14], %15 {strides = array<i32>} : memref<8x128xf32, #tpu.memory_space<vmem>>, vector<8x128xf32>,
    %17 = arith.subf %15, %0 : vector<8x128xf32>
    %18 = arith.mulf %17, %17 : vector<8x128xf32>
    %19 = vector.shape_cast %18 : vector<8x128xf32> to vector<1x8x128xf32>
    %cst_15 = arith.constant dense<0.000000e+00> : vector<1xf32>
    %20 = vector.multi_reduction <add>, %19, %cst_15 [1, 2] : vector<1x8x128xf32> to vector<1xf32>
    %21 = vector.shape_cast %20 : vector<1xf32> to vector<1x1x1xf32>
    %22 = vector.extract %21[0, 0, 0] : f32 from vector<1x1x1xf32>
    %23 = vector.broadcast %22 : f32 to vector<1x8x128xf32>
    %c0_16 = arith.constant 0 : index
    %c0_17 = arith.constant 0 : index
    %c0_18 = arith.constant 0 : index
    %24 = vector.load %arg8[%c0_16, %c0_17, %c0_18] : memref<1x8x128xf32, #tpu.memory_space<vmem>>, vector<1x8x128xf32>
    tpu.vector_store %arg8[%c0_16, %c0_17, %c0_18], %23 {strides = array<i32>} : memref<1x8x128xf32, #tpu.memory_space<vmem>>, vector<1x8x128xf32>,
    %25 = math.absf %10 : vector<8x256xf32>
    %26 = vector.shape_cast %25 : vector<8x256xf32> to vector<1x8x256xf32>
    %cst_19 = arith.constant dense<0.000000e+00> : vector<1xf32>
    %27 = vector.multi_reduction <add>, %26, %cst_19 [1, 2] : vector<1x8x256xf32> to vector<1xf32>
    %28 = vector.shape_cast %27 : vector<1xf32> to vector<1x1x1xf32>
    %29 = vector.extract %28[0, 0, 0] : f32 from vector<1x1x1xf32>
    %30 = vector.broadcast %29 : f32 to vector<1x8x128xf32>
    %c0_20 = arith.constant 0 : index
    %c0_21 = arith.constant 0 : index
    %c0_22 = arith.constant 0 : index
    %31 = vector.load %arg9[%c0_20, %c0_21, %c0_22] : memref<1x8x128xf32, #tpu.memory_space<vmem>>, vector<1x8x128xf32>
    tpu.vector_store %arg9[%c0_20, %c0_21, %c0_22], %30 {strides = array<i32>} : memref<1x8x128xf32, #tpu.memory_space<vmem>>, vector<1x8x128xf32>,
    return
  }
  func.func @transform_0(%arg0: i32) -> (i32, i32) {
    %c0_i32 = arith.constant 0 : i32
    %c0_i32_0 = arith.constant 0 : i32
    return %arg0, %c0_i32 : i32, i32
  }
  func.func @transform_1(%arg0: i32) -> (i32, i32) {
    %c0_i32 = arith.constant 0 : i32
    %c0_i32_0 = arith.constant 0 : i32
    %c0_i32_1 = arith.constant 0 : i32
    return %c0_i32, %c0_i32_0 : i32, i32
  }
  func.func @transform_2(%arg0: i32) -> (i32, i32) {
    %c0_i32 = arith.constant 0 : i32
    %c0_i32_0 = arith.constant 0 : i32
    %c0_i32_1 = arith.constant 0 : i32
    return %c0_i32, %c0_i32_0 : i32, i32
  }
  func.func @transform_3(%arg0: i32) -> (i32, i32) {
    %c0_i32 = arith.constant 0 : i32
    %c0_i32_0 = arith.constant 0 : i32
    %c0_i32_1 = arith.constant 0 : i32
    return %c0_i32, %c0_i32_0 : i32, i32
  }
  func.func @transform_4(%arg0: i32) -> (i32, i32) {
    %c0_i32 = arith.constant 0 : i32
    %c0_i32_0 = arith.constant 0 : i32
    %c0_i32_1 = arith.constant 0 : i32
    return %c0_i32, %c0_i32_0 : i32, i32
  }
  func.func @transform_5(%arg0: i32) -> (i32, i32) {
    %c0_i32 = arith.constant 0 : i32
    %c0_i32_0 = arith.constant 0 : i32
    return %arg0, %c0_i32 : i32, i32
  }
  func.func @transform_6(%arg0: i32) -> (i32, i32) {
    %c0_i32 = arith.constant 0 : i32
    %c0_i32_0 = arith.constant 0 : i32
    return %arg0, %c0_i32 : i32, i32
  }
  func.func @transform_7(%arg0: i32) -> (i32, i32, i32) {
    %c0_i32 = arith.constant 0 : i32
    %c0_i32_0 = arith.constant 0 : i32
    %c0_i32_1 = arith.constant 0 : i32
    return %arg0, %c0_i32, %c0_i32_0 : i32, i32, i32
  }
  func.func @transform_8(%arg0: i32) -> (i32, i32, i32) {
    %c0_i32 = arith.constant 0 : i32
    %c0_i32_0 = arith.constant 0 : i32
    %c0_i32_1 = arith.constant 0 : i32
    return %arg0, %c0_i32, %c0_i32_0 : i32, i32, i32
  }
}

</mosaic_0001>

<llo_original>
// kernel: tpu_custom_call.1
$region0: #{tpu_custom_call.1}
  #allocation0 [shape = 'u32[]', space=smem, size = 0x4, offset = 0x4, fixed_abs, tag = 'smem constant byte address 0x4 - core index']
  #allocation1 [shape = 'u32[72,128]{1,0:T(1,128)}', space=vmem, size = 0x9000, scoped, tag = 'internal scratch']
  %s0 = inlined_call_operand.hbm [shape: f32[8,128], index: 0, kind: input, shape index: {}]
  %s1 = inlined_call_operand.hbm [shape: f32[128,256], index: 1, kind: input, shape index: {}]
  %s2 = inlined_call_operand.hbm [shape: f32[1,256], index: 2, kind: input, shape index: {}]
  %s3 = inlined_call_operand.hbm [shape: f32[256,128], index: 3, kind: input, shape index: {}]
  %s4 = inlined_call_operand.vmem [shape: f32[1,128], index: 4, kind: input, shape index: {}]
  %s5 = inlined_call_operand.hbm [shape: f32[8,128], index: 5, kind: output, shape index: {0}]
  %s6 = inlined_call_operand.hbm [shape: f32[8,256], index: 6, kind: output, shape index: {1}]
  %s7 = inlined_call_operand.hbm [shape: f32[1,8,128], index: 7, kind: output, shape index: {2}]
  %s8 = inlined_call_operand.hbm [shape: f32[1,8,128], index: 8, kind: output, shape index: {3}]
  %9 = xla_tuple %s5, %s6, %s7, %s8
  %s10 = sld [smem:[#allocation0]]
  $region70: #{tpu_custom_call.1} parent=0
    _
  %s12 = ssub.s32 1, %s10
  %s13 = scalar_select 0, %s12, %s10
  $region1: #{tpu_custom_call.1} parent=0
    #allocation2 [shape = 'u8[4096]{0}', space=vmem, size = 0x1000, scoped, tag = 'input window, operand 0, single buffered']
    #allocation3 [shape = 's32[1]{0}', space=sflag, size = 0x4, scoped, tag = 'scoped memory for tpu_custom_call.1']
    #allocation4 [shape = 's32[1]{0}', space=sflag, size = 0x4, scoped, tag = 'scoped memory for tpu_custom_call.1']
    #allocation5 [shape = 'u8[131072]{0}', space=vmem, size = 0x20000, scoped, tag = 'input window, operand 1, single buffered']
    #allocation6 [shape = 's32[1]{0}', space=sflag, size = 0x4, scoped, tag = 'scoped memory for tpu_custom_call.1']
    #allocation7 [shape = 'u8[1024]{0}', space=vmem, size = 0x400, scoped, tag = 'input window, operand 2, single buffered']
    #allocation8 [shape = 'u8[131072]{0}', space=vmem, size = 0x20000, scoped, tag = 'input window, operand 3, single buffered']
    #allocation9 [shape = 's32[1]{0}', space=sflag, size = 0x4, scoped, tag = 'scoped memory for tpu_custom_call.1']
    #allocation10 [shape = 'u8[4096]{0}', space=vmem, size = 0x1000, scoped, tag = 'output window, operand 0, single buffered']
    #allocation11 [shape = 'u8[8192]{0}', space=vmem, size = 0x2000, scoped, tag = 'output window, operand 1, single buffered']
    #allocation12 [shape = 's32[1]{0}', space=sflag, size = 0x4, scoped, tag = 'scoped memory for tpu_custom_call.1']
    #allocation13 [shape = 'u8[4096]{0}', space=vmem, size = 0x1000, scoped, tag = 'output window, operand 2, single buffered']
    #allocation14 [shape = 'u8[4096]{0}', space=vmem, size = 0x1000, scoped, tag = 'output window, operand 3, single buffered']
    #allocation15 [shape = 's32[1]{0}', space=sflag, size = 0x4, scoped, tag = 'scoped memory for tpu_custom_call.1']
    %14 = vsyncpa [#allocation3], 0
    %15 = vsyncpa [#allocation6], 0
    %16 = vsyncpa [#allocation9], 0
    %17 = vsyncpa [#allocation4], 0
    %18 = vsyncpa [#allocation12], 0
    %19 = vsyncpa [#allocation15], 0
    // Predicated region
    $region2: #{tpu_custom_call.1} parent=1 // pred_check
      _
    $region3: #{tpu_custom_call.1} parent=1 // pred_check_branch
      %21 = sbr.rel (0) target = $region5
    $region4: #{tpu_custom_call.1} parent=1 // pred_region
      %23 = vsyncadd [#allocation3], 0
      %s25 = sshll.u32 %s0, 4
      %s26 = int_to_ptr.hbm [resolvable:$true] %s25
      %s27 = sshll.u32 [#allocation2], 4
      %s28 = int_to_ptr.vmem [resolvable:$true] %s27
      %30 = dma.hbm_to_vmem [thread:$0]  %s26, 128, %s28, [#allocation3]
    $region5: #{tpu_custom_call.1} parent=1 // pred_fallthru
      _
    // Predicated region
    $region6: #{tpu_custom_call.1} parent=1 // pred_check
      _
    $region7: #{tpu_custom_call.1} parent=1 // pred_check_branch
      %32 = sbr.rel (0) target = $region9
    $region8: #{tpu_custom_call.1} parent=1 // pred_region
      %34 = vsyncadd [#allocation6], 0
      %s35 = sshll.u32 %s1, 4
      %s36 = int_to_ptr.hbm [resolvable:$true] %s35
      %s37 = sshll.u32 [#allocation5], 4
      %s38 = int_to_ptr.vmem [resolvable:$true] %s37
      %43 = dma.hbm_to_vmem [thread:$0]  %s36, 4096, %s38, [#allocation6], 256, 256, 16
    $region9: #{tpu_custom_call.1} parent=1 // pred_fallthru
      _
    // Predicated region
    $region10: #{tpu_custom_call.1} parent=1 // pred_check
      _
    $region11: #{tpu_custom_call.1} parent=1 // pred_check_branch
      %45 = sbr.rel (0) target = $region13
    $region12: #{tpu_custom_call.1} parent=1 // pred_region
      %47 = vsyncadd [#allocation6], 0
      %s49 = sshll.u32 %s2, 4
      %s50 = int_to_ptr.hbm [resolvable:$true] %s49
      %s51 = sshll.u32 [#allocation7], 4
      %s52 = int_to_ptr.vmem [resolvable:$true] %s51
      %54 = dma.hbm_to_vmem [thread:$0]  %s50, 32, %s52, [#allocation6]
    $region13: #{tpu_custom_call.1} parent=1 // pred_fallthru
      _
    // Predicated region
    $region14: #{tpu_custom_call.1} parent=1 // pred_check
      _
    $region15: #{tpu_custom_call.1} parent=1 // pred_check_branch
      %56 = sbr.rel (0) target = $region17
    $region16: #{tpu_custom_call.1} parent=1 // pred_region
      %58 = vsyncadd [#allocation9], 0
      %s59 = sshll.u32 %s3, 4
      %s60 = int_to_ptr.hbm [resolvable:$true] %s59
      %s61 = sshll.u32 [#allocation8], 4
      %s62 = int_to_ptr.vmem [resolvable:$true] %s61
      %67 = dma.hbm_to_vmem [thread:$0]  %s60, 4096, %s62, [#allocation9], 128, 128, 8
    $region17: #{tpu_custom_call.1} parent=1 // pred_fallthru
      _
    // Predicated region
    $region18: #{tpu_custom_call.1} parent=1 // pred_check
      _
    $region19: #{tpu_custom_call.1} parent=1 // pred_check_branch
      %69 = sbr.rel (0) target = $region21
    $region20: #{tpu_custom_call.1} parent=1 // pred_region
      _
    $region21: #{tpu_custom_call.1} parent=1 // pred_fallthru
      _
    // Predicated region
    $region22: #{tpu_custom_call.1} parent=1 // pred_check
      _
    $region23: #{tpu_custom_call.1} parent=1 // pred_check_branch
      %71 = sbr.rel (0) target = $region25
    $region24: #{tpu_custom_call.1} parent=1 // pred_region
      %73 = dma.done [#allocation3], 128
    $region25: #{tpu_custom_call.1} parent=1 // pred_fallthru
      _
    // Predicated region
    $region26: #{tpu_custom_call.1} parent=1 // pred_check
      _
    $region27: #{tpu_custom_call.1} parent=1 // pred_check_branch
      %75 = sbr.rel (0) target = $region29
    $region28: #{tpu_custom_call.1} parent=1 // pred_region
      %77 = dma.done [#allocation6], 4096
    $region29: #{tpu_custom_call.1} parent=1 // pred_fallthru
      _
    // Predicated region
    $region30: #{tpu_custom_call.1} parent=1 // pred_check
      _
    $region31: #{tpu_custom_call.1} parent=1 // pred_check_branch
      %79 = sbr.rel (0) target = $region33
    $region32: #{tpu_custom_call.1} parent=1 // pred_region
      %81 = dma.done [#allocation6], 32
    $region33: #{tpu_custom_call.1} parent=1 // pred_fallthru
      _
    // Predicated region
    $region34: #{tpu_custom_call.1} parent=1 // pred_check
      _
    $region35: #{tpu_custom_call.1} parent=1 // pred_check_branch
      %83 = sbr.rel (0) target = $region37
    $region36: #{tpu_custom_call.1} parent=1 // pred_region
      %85 = dma.done [#allocation9], 4096
    $region37: #{tpu_custom_call.1} parent=1 // pred_fallthru
      _
    %v86 = vld [vmem:[#allocation2] sm:$0xff]
    %v87 = vld [vmem:[%s4] sm:$0x1]
    %v89 = vperm.slane %v87, 0
    %v91 = vsub.f32 %v86, %v89
    %v92 = vld [vmem:[#allocation5] sm:$0xff]
    %v93 = vld [vmem:[#allocation5 + $0x8] sm:$0xff]
    %v94 = vld [vmem:[#allocation5 + $0x10] sm:$0xff]
    %v95 = vld [vmem:[#allocation5 + $0x18] sm:$0xff]
    %v96 = vld [vmem:[#allocation5 + $0x20] sm:$0xff]
    %v97 = vld [vmem:[#allocation5 + $0x28] sm:$0xff]
    %v98 = vld [vmem:[#allocation5 + $0x30] sm:$0xff]
    %v99 = vld [vmem:[#allocation5 + $0x38] sm:$0xff]
    %v100 = vld [vmem:[#allocation5 + $0x40] sm:$0xff]
    %v101 = vld [vmem:[#allocation5 + $0x48] sm:$0xff]
    %v102 = vld [vmem:[#allocation5 + $0x50] sm:$0xff]
    %v103 = vld [vmem:[#allocation5 + $0x58] sm:$0xff]
    %v104 = vld [vmem:[#allocation5 + $0x60] sm:$0xff]
    %v105 = vld [vmem:[#allocation5 + $0x68] sm:$0xff]
    %v106 = vld [vmem:[#allocation5 + $0x70] sm:$0xff]
    %v107 = vld [vmem:[#allocation5 + $0x78] sm:$0xff]
    %v108 = vld [vmem:[#allocation5 + $0x80] sm:$0xff]
    %v109 = vld [vmem:[#allocation5 + $0x88] sm:$0xff]
    %v110 = vld [vmem:[#allocation5 + $0x90] sm:$0xff]
    %v111 = vld [vmem:[#allocation5 + $0x98] sm:$0xff]
    %v112 = vld [vmem:[#allocation5 + $0xa0] sm:$0xff]
    %v113 = vld [vmem:[#allocation5 + $0xa8] sm:$0xff]
    %v114 = vld [vmem:[#allocation5 + $0xb0] sm:$0xff]
    %v115 = vld [vmem:[#allocation5 + $0xb8] sm:$0xff]
    %v116 = vld [vmem:[#allocation5 + $0xc0] sm:$0xff]
    %v117 = vld [vmem:[#allocation5 + $0xc8] sm:$0xff]
    %v118 = vld [vmem:[#allocation5 + $0xd0] sm:$0xff]
    %v119 = vld [vmem:[#allocation5 + $0xd8] sm:$0xff]
    %v120 = vld [vmem:[#allocation5 + $0xe0] sm:$0xff]
    %v121 = vld [vmem:[#allocation5 + $0xe8] sm:$0xff]
    %v122 = vld [vmem:[#allocation5 + $0xf0] sm:$0xff]
    %v123 = vld [vmem:[#allocation5 + $0xf8] sm:$0xff]
    %v124 = vld [vmem:[#allocation7] sm:$0x3]
    %v126 = vperm.slane %v124, 0
    %v127 = vperm.slane %v124, 1
    %130 = vmatpush.msra.mxu0 %v122
    %131 = vmatpush.msra.mxu0 %v120
    %132 = vmatpush.msra.mxu0 %v118
    %133 = vmatpush.msra.mxu0 %v116
    %134 = vmatpush.msra.mxu0 %v114
    %135 = vmatpush.msra.mxu0 %v112
    %136 = vmatpush.msra.mxu0 %v110
    %137 = vmatpush.msra.mxu0 %v108
    %138 = vmatpush.msra.mxu0 %v106
    %139 = vmatpush.msra.mxu0 %v104
    %140 = vmatpush.msra.mxu0 %v102
    %141 = vmatpush.msra.mxu0 %v100
    %142 = vmatpush.msra.mxu0 %v98
    %143 = vmatpush.msra.mxu0 %v96
    %144 = vmatpush.msra.mxu0 %v94
    %145 = vmatpush.msra.mxu0 %v92
    %146 = vmatmul.f32.gmra.mxu0 %v91
    %v147 = vpop.f32.mrf.mxu0
    %v148 = vadd.f32 %v126, %v147
    %149 = vdwg.mxu0
    %150 = vmatpush.msra.mxu0 %v123
    %151 = vmatpush.msra.mxu0 %v121
    %152 = vmatpush.msra.mxu0 %v119
    %153 = vmatpush.msra.mxu0 %v117
    %154 = vmatpush.msra.mxu0 %v115
    %155 = vmatpush.msra.mxu0 %v113
    %156 = vmatpush.msra.mxu0 %v111
    %157 = vmatpush.msra.mxu0 %v109
    %158 = vmatpush.msra.mxu0 %v107
    %159 = vmatpush.msra.mxu0 %v105
    %160 = vmatpush.msra.mxu0 %v103
    %161 = vmatpush.msra.mxu0 %v101
    %162 = vmatpush.msra.mxu0 %v99
    %163 = vmatpush.msra.mxu0 %v97
    %164 = vmatpush.msra.mxu0 %v95
    %165 = vmatpush.msra.mxu0 %v93
    %166 = vmatmul.f32.gmra.mxu0 %v91
    %v167 = vpop.f32.mrf.mxu0
    %v168 = vadd.f32 %v127, %v167
    %169 = vdwg.mxu0
    %v170 = vmax.f32 %v148, 0.0
    %v171 = vmax.f32 %v168, 0.0
    %172 = vst [vmem:[#allocation11] sm:$0xff] %v170
    %173 = vst [vmem:[#allocation11 + $0x8] sm:$0xff] %v171
    %v174 = vld [vmem:[#allocation8] sm:$0xff]
    %v175 = vld [vmem:[#allocation8 + $0x8] sm:$0xff]
    %v176 = vld [vmem:[#allocation8 + $0x10] sm:$0xff]
    %v177 = vld [vmem:[#allocation8 + $0x18] sm:$0xff]
    %v178 = vld [vmem:[#allocation8 + $0x20] sm:$0xff]
    %v179 = vld [vmem:[#allocation8 + $0x28] sm:$0xff]
    %v180 = vld [vmem:[#allocation8 + $0x30] sm:$0xff]
    %v181 = vld [vmem:[#allocation8 + $0x38] sm:$0xff]
    %v182 = vld [vmem:[#allocation8 + $0x40] sm:$0xff]
    %v183 = vld [vmem:[#allocation8 + $0x48] sm:$0xff]
    %v184 = vld [vmem:[#allocation8 + $0x50] sm:$0xff]
    %v185 = vld [vmem:[#allocation8 + $0x58] sm:$0xff]
    %v186 = vld [vmem:[#allocation8 + $0x60] sm:$0xff]
    %v187 = vld [vmem:[#allocation8 + $0x68] sm:$0xff]
    %v188 = vld [vmem:[#allocation8 + $0x70] sm:$0xff]
    %v189 = vld [vmem:[#allocation8 + $0x78] sm:$0xff]
    %v190 = vld [vmem:[#allocation8 + $0x80] sm:$0xff]
    %v191 = vld [vmem:[#allocation8 + $0x88] sm:$0xff]
    %v192 = vld [vmem:[#allocation8 + $0x90] sm:$0xff]
    %v193 = vld [vmem:[#allocation8 + $0x98] sm:$0xff]
    %v194 = vld [vmem:[#allocation8 + $0xa0] sm:$0xff]
    %v195 = vld [vmem:[#allocation8 + $0xa8] sm:$0xff]
    %v196 = vld [vmem:[#allocation8 + $0xb0] sm:$0xff]
    %v197 = vld [vmem:[#allocation8 + $0xb8] sm:$0xff]
    %v198 = vld [vmem:[#allocation8 + $0xc0] sm:$0xff]
    %v199 = vld [vmem:[#allocation8 + $0xc8] sm:$0xff]
    %v200 = vld [vmem:[#allocation8 + $0xd0] sm:$0xff]
    %v201 = vld [vmem:[#allocation8 + $0xd8] sm:$0xff]
    %v202 = vld [vmem:[#allocation8 + $0xe0] sm:$0xff]
    %v203 = vld [vmem:[#allocation8 + $0xe8] sm:$0xff]
    %v204 = vld [vmem:[#allocation8 + $0xf0] sm:$0xff]
    %v205 = vld [vmem:[#allocation8 + $0xf8] sm:$0xff]
    %206 = vmatpush.msra.mxu0 %v189
    %207 = vmatpush.msra.mxu0 %v188
    %208 = vmatpush.msra.mxu0 %v187
    %209 = vmatpush.msra.mxu0 %v186
    %210 = vmatpush.msra.mxu0 %v185
    %211 = vmatpush.msra.mxu0 %v184
    %212 = vmatpush.msra.mxu0 %v183
    %213 = vmatpush.msra.mxu0 %v182
    %214 = vmatpush.msra.mxu0 %v181
    %215 = vmatpush.msra.mxu0 %v180
    %216 = vmatpush.msra.mxu0 %v179
    %217 = vmatpush.msra.mxu0 %v178
    %218 = vmatpush.msra.mxu0 %v177
    %219 = vmatpush.msra.mxu0 %v176
    %220 = vmatpush.msra.mxu0 %v175
    %221 = vmatpush.msra.mxu0 %v174
    %222 = vmatmul.f32.gmra.mxu0 %v170
    %v223 = vpop.f32.mrf.mxu0
    %v224 = vadd.f32 %v89, %v223
    %225 = vdwg.mxu0
    %226 = vmatpush.msra.mxu0 %v205
    %227 = vmatpush.msra.mxu0 %v204
    %228 = vmatpush.msra.mxu0 %v203
    %229 = vmatpush.msra.mxu0 %v202
    %230 = vmatpush.msra.mxu0 %v201
    %231 = vmatpush.msra.mxu0 %v200
    %232 = vmatpush.msra.mxu0 %v199
    %233 = vmatpush.msra.mxu0 %v198
    %234 = vmatpush.msra.mxu0 %v197
    %235 = vmatpush.msra.mxu0 %v196
    %236 = vmatpush.msra.mxu0 %v195
    %237 = vmatpush.msra.mxu0 %v194
    %238 = vmatpush.msra.mxu0 %v193
    %239 = vmatpush.msra.mxu0 %v192
    %240 = vmatpush.msra.mxu0 %v191
    %241 = vmatpush.msra.mxu0 %v190
    %242 = vmatmul.f32.gmra.mxu0 %v171
    %v243 = vpop.f32.mrf.mxu0
    %v244 = vadd.f32 %v224, %v243
    %245 = vdwg.mxu0
    %246 = vst [vmem:[#allocation10] sm:$0xff] %v244
    %v247 = vsub.f32 %v244, %v86
    %v248 = vmul.f32 %v247, %v247
    %249 = vadd.xlane.f32.xlu0 %v248
    %v250 = vpop.xlane.xlu0 %249
    %v251 = vrot.slane %v250, 4
    %v252 = vadd.f32 %v250, %v251
    %v253 = vrot.slane %v252, 2
    %v254 = vadd.f32 %v252, %v253
    %v255 = vrot.slane %v254, 1
    %v256 = vadd.f32 %v254, %v255
    %s257 = vtos %v256
    %v258 = vstv %s257
    %259 = vst [vmem:[#allocation13] sm:$0xff] %v258
    %v260 = vand.u32 2147483647, %v170
    %v261 = vand.u32 2147483647, %v171
    %v262 = vadd.f32 %v260, %v261
    %263 = vadd.xlane.f32.xlu0 %v262
    %v264 = vpop.xlane.xlu0 %263
    %v265 = vrot.slane %v264, 4
    %v266 = vadd.f32 %v264, %v265
    %v267 = vrot.slane %v266, 2
    %v268 = vadd.f32 %v266, %v267
    %v269 = vrot.slane %v268, 1
    %v270 = vadd.f32 %v268, %v269
    %s271 = vtos %v270
    %v272 = vstv %s271
    %273 = vst [vmem:[#allocation14] sm:$0xff] %v272
    // Predicated region
    $region38: #{tpu_custom_call.1} parent=1 // pred_check
      _
    $region39: #{tpu_custom_call.1} parent=1 // pred_check_branch
      %275 = sbr.rel (0) target = $region41
    $region40: #{tpu_custom_call.1} parent=1 // pred_region
      %277 = vsyncadd [#allocation4], 0
      %s279 = sshll.u32 [#allocation10], 4
      %s280 = int_to_ptr.vmem [resolvable:$true] %s279
      %s281 = sshll.u32 %s5, 4
      %s282 = int_to_ptr.hbm [resolvable:$true] %s281
      %284 = dma.vmem_to_hbm [thread:$0]  %s280, 128, %s282, [#allocation4]
    $region41: #{tpu_custom_call.1} parent=1 // pred_fallthru
      _
    // Predicated region
    $region42: #{tpu_custom_call.1} parent=1 // pred_check
      _
    $region43: #{tpu_custom_call.1} parent=1 // pred_check_branch
      %286 = sbr.rel (0) target = $region45
    $region44: #{tpu_custom_call.1} parent=1 // pred_region
      %288 = vsyncadd [#allocation12], 0
      %s290 = sshll.u32 [#allocation11], 4
      %s291 = int_to_ptr.vmem [resolvable:$true] %s290
      %s292 = sshll.u32 %s6, 4
      %s293 = int_to_ptr.hbm [resolvable:$true] %s292
      %295 = dma.vmem_to_hbm [thread:$0]  %s291, 256, %s293, [#allocation12]
    $region45: #{tpu_custom_call.1} parent=1 // pred_fallthru
      _
    // Predicated region
    $region46: #{tpu_custom_call.1} parent=1 // pred_check
      _
    $region47: #{tpu_custom_call.1} parent=1 // pred_check_branch
      %297 = sbr.rel (0) target = $region49
    $region48: #{tpu_custom_call.1} parent=1 // pred_region
      %299 = vsyncadd [#allocation12], 0
      %s301 = sshll.u32 [#allocation13], 4
      %s302 = int_to_ptr.vmem [resolvable:$true] %s301
      %s303 = sshll.u32 %s7, 4
      %s304 = int_to_ptr.hbm [resolvable:$true] %s303
      %306 = dma.vmem_to_hbm [thread:$0]  %s302, 128, %s304, [#allocation12]
    $region49: #{tpu_custom_call.1} parent=1 // pred_fallthru
      _
    // Predicated region
    $region50: #{tpu_custom_call.1} parent=1 // pred_check
      _
    $region51: #{tpu_custom_call.1} parent=1 // pred_check_branch
      %308 = sbr.rel (0) target = $region53
    $region52: #{tpu_custom_call.1} parent=1 // pred_region
      %310 = vsyncadd [#allocation15], 0
      %s312 = sshll.u32 [#allocation14], 4
      %s313 = int_to_ptr.vmem [resolvable:$true] %s312
      %s314 = sshll.u32 %s8, 4
      %s315 = int_to_ptr.hbm [resolvable:$true] %s314
      %317 = dma.vmem_to_hbm [thread:$0]  %s313, 128, %s315, [#allocation15]
    $region53: #{tpu_custom_call.1} parent=1 // pred_fallthru
      _
    // Predicated region
    $region54: #{tpu_custom_call.1} parent=1 // pred_check
      _
    $region55: #{tpu_custom_call.1} parent=1 // pred_check_branch
      %319 = sbr.rel (0) target = $region57
    $region56: #{tpu_custom_call.1} parent=1 // pred_region
      %321 = dma.done [#allocation4], 128
    $region57: #{tpu_custom_call.1} parent=1 // pred_fallthru
      _
    // Predicated region
    $region58: #{tpu_custom_call.1} parent=1 // pred_check
      _
    $region59: #{tpu_custom_call.1} parent=1 // pred_check_branch
      %323 = sbr.rel (0) target = $region61
    $region60: #{tpu_custom_call.1} parent=1 // pred_region
      %325 = dma.done [#allocation12], 256
    $region61: #{tpu_custom_call.1} parent=1 // pred_fallthru
      _
    // Predicated region
    $region62: #{tpu_custom_call.1} parent=1 // pred_check
      _
    $region63: #{tpu_custom_call.1} parent=1 // pred_check_branch
      %327 = sbr.rel (0) target = $region65
    $region64: #{tpu_custom_call.1} parent=1 // pred_region
      %329 = dma.done [#allocation12], 128
    $region65: #{tpu_custom_call.1} parent=1 // pred_fallthru
      _
    // Predicated region
    $region66: #{tpu_custom_call.1} parent=1 // pred_check
      _
    $region67: #{tpu_custom_call.1} parent=1 // pred_check_branch
      %331 = sbr.rel (0) target = $region69
    $region68: #{tpu_custom_call.1} parent=1 // pred_region
      %333 = dma.done [#allocation15], 128
    $region69: #{tpu_custom_call.1} parent=1 // pred_fallthru
      _
    %334 = vsyncpa [#allocation3], 1
    %335 = vsyncpa [#allocation6], 1
    %336 = vsyncpa [#allocation9], 1
    %337 = vsyncpa [#allocation4], 1
    %338 = vsyncpa [#allocation12], 1
    %339 = vsyncpa [#allocation15], 1

// kernel: tpu_custom_call.1
$region0: #{tpu_custom_call.1}
  #allocation0 [shape = 'u32[]', space=smem, size = 0x4, offset = 0x4, fixed_abs, tag = 'smem constant byte address 0x4 - core index']
  #allocation1 [shape = 'u32[72,128]{1,0:T(1,128)}', space=vmem, size = 0x9000, scoped, tag = 'internal scratch']
  %s0 = inlined_call_operand.hbm [shape: f32[8,128], index: 0, kind: input, shape index: {}]
  %s1 = inlined_call_operand.hbm [shape: f32[128,256], index: 1, kind: input, shape index: {}]
  %s2 = inlined_call_operand.hbm [shape: f32[1,256], index: 2, kind: input, shape index: {}]
  %s3 = inlined_call_operand.hbm [shape: f32[256,128], index: 3, kind: input, shape index: {}]
  %s4 = inlined_call_operand.vmem [shape: f32[1,128], index: 4, kind: input, shape index: {}]
  %s5 = inlined_call_operand.hbm [shape: f32[8,128], index: 5, kind: output, shape index: {0}]
  %s6 = inlined_call_operand.hbm [shape: f32[8,256], index: 6, kind: output, shape index: {1}]
  %s7 = inlined_call_operand.hbm [shape: f32[1,8,128], index: 7, kind: output, shape index: {2}]
  %s8 = inlined_call_operand.hbm [shape: f32[1,8,128], index: 8, kind: output, shape index: {3}]
  %9 = xla_tuple %s5, %s6, %s7, %s8
  %s10 = sld [smem:[#allocation0]]
  $region70: #{tpu_custom_call.1} parent=0
    _
  %s12 = ssub.s32 1, %s10
  %s13 = scalar_select 0, %s12, %s10
  $region1: #{tpu_custom_call.1} parent=0
    #allocation2 [shape = 'u8[4096]{0}', space=vmem, size = 0x1000, scoped, tag = 'input window, operand 0, single buffered']
    #allocation3 [shape = 's32[1]{0}', space=sflag, size = 0x4, scoped, tag = 'scoped memory for tpu_custom_call.1']
    #allocation4 [shape = 's32[1]{0}', space=sflag, size = 0x4, scoped, tag = 'scoped memory for tpu_custom_call.1']
    #allocation5 [shape = 'u8[131072]{0}', space=vmem, size = 0x20000, scoped, tag = 'input window, operand 1, single buffered']
    #allocation6 [shape = 's32[1]{0}', space=sflag, size = 0x4, scoped, tag = 'scoped memory for tpu_custom_call.1']
    #allocation7 [shape = 'u8[1024]{0}', space=vmem, size = 0x400, scoped, tag = 'input window, operand 2, single buffered']
    #allocation8 [shape = 'u8[131072]{0}', space=vmem, size = 0x20000, scoped, tag = 'input window, operand 3, single buffered']
    #allocation9 [shape = 's32[1]{0}', space=sflag, size = 0x4, scoped, tag = 'scoped memory for tpu_custom_call.1']
    #allocation10 [shape = 'u8[4096]{0}', space=vmem, size = 0x1000, scoped, tag = 'output window, operand 0, single buffered']
    #allocation11 [shape = 'u8[8192]{0}', space=vmem, size = 0x2000, scoped, tag = 'output window, operand 1, single buffered']
    #allocation12 [shape = 's32[1]{0}', space=sflag, size = 0x4, scoped, tag = 'scoped memory for tpu_custom_call.1']
    #allocation13 [shape = 'u8[4096]{0}', space=vmem, size = 0x1000, scoped, tag = 'output window, operand 2, single buffered']
    #allocation14 [shape = 'u8[4096]{0}', space=vmem, size = 0x1000, scoped, tag = 'output window, operand 3, single buffered']
    #allocation15 [shape = 's32[1]{0}', space=sflag, size = 0x4, scoped, tag = 'scoped memory for tpu_custom_call.1']
    %14 = vsyncpa [#allocation3], 0
    %15 = vsyncpa [#allocation6], 0
    %16 = vsyncpa [#allocation9], 0
    %17 = vsyncpa [#allocation4], 0
    %18 = vsyncpa [#allocation12], 0
    %19 = vsyncpa [#allocation15], 0
    // Predicated region
    $region2: #{tpu_custom_call.1} parent=1 // pred_check
      _
    $region3: #{tpu_custom_call.1} parent=1 // pred_check_branch
      %21 = sbr.rel (0) target = $region5
    $region4: #{tpu_custom_call.1} parent=1 // pred_region
      %23 = vsyncadd [#allocation3], 0
      %s25 = sshll.u32 %s0, 4
      %s26 = int_to_ptr.hbm [resolvable:$true] %s25
      %s27 = sshll.u32 [#allocation2], 4
      %s28 = int_to_ptr.vmem [resolvable:$true] %s27
      %30 = dma.hbm_to_vmem [thread:$0]  %s26, 128, %s28, [#allocation3]
    $region5: #{tpu_custom_call.1} parent=1 // pred_fallthru
      _
    // Predicated region
    $region6: #{tpu_custom_call.1} parent=1 // pred_check
      _
    $region7: #{tpu_custom_call.1} parent=1 // pred_check_branch
      %32 = sbr.rel (0) target = $region9
    $region8: #{tpu_custom_call.1} parent=1 // pred_region
      %34 = vsyncadd [#allocation6], 0
      %s35 = sshll.u32 %s1, 4
      %s36 = int_to_ptr.hbm [resolvable:$true] %s35
      %s37 = sshll.u32 [#allocation5], 4
      %s38 = int_to_ptr.vmem [resolvable:$true] %s37
      %43 = dma.hbm_to_vmem [thread:$0]  %s36, 4096, %s38, [#allocation6], 256, 256, 16
    $region9: #{tpu_custom_call.1} parent=1 // pred_fallthru
      _
    // Predicated region
    $region10: #{tpu_custom_call.1} parent=1 // pred_check
      _
    $region11: #{tpu_custom_call.1} parent=1 // pred_check_branch
      %45 = sbr.rel (0) target = $region13
    $region12: #{tpu_custom_call.1} parent=1 // pred_region
      %47 = vsyncadd [#allocation6], 0
      %s49 = sshll.u32 %s2, 4
      %s50 = int_to_ptr.hbm [resolvable:$true] %s49
      %s51 = sshll.u32 [#allocation7], 4
      %s52 = int_to_ptr.vmem [resolvable:$true] %s51
      %54 = dma.hbm_to_vmem [thread:$0]  %s50, 32, %s52, [#allocation6]
    $region13: #{tpu_custom_call.1} parent=1 // pred_fallthru
      _
    // Predicated region
    $region14: #{tpu_custom_call.1} parent=1 // pred_check
      _
    $region15: #{tpu_custom_call.1} parent=1 // pred_check_branch
      %56 = sbr.rel (0) target = $region17
    $region16: #{tpu_custom_call.1} parent=1 // pred_region
      %58 = vsyncadd [#allocation9], 0
      %s59 = sshll.u32 %s3, 4
      %s60 = int_to_ptr.hbm [resolvable:$true] %s59
      %s61 = sshll.u32 [#allocation8], 4
      %s62 = int_to_ptr.vmem [resolvable:$true] %s61
      %67 = dma.hbm_to_vmem [thread:$0]  %s60, 4096, %s62, [#allocation9], 128, 128, 8
    $region17: #{tpu_custom_call.1} parent=1 // pred_fallthru
      _
    // Predicated region
    $region18: #{tpu_custom_call.1} parent=1 // pred_check
      _
    $region19: #{tpu_custom_call.1} parent=1 // pred_check_branch
      %69 = sbr.rel (0) target = $region21
    $region20: #{tpu_custom_call.1} parent=1 // pred_region
      _
    $region21: #{tpu_custom_call.1} parent=1 // pred_fallthru
      _
    // Predicated region
    $region22: #{tpu_custom_call.1} parent=1 // pred_check
      _
    $region23: #{tpu_custom_call.1} parent=1 // pred_check_branch
      %71 = sbr.rel (0) target = $region25
    $region24: #{tpu_custom_call.1} parent=1 // pred_region
      %73 = dma.done [#allocation3], 128
    $region25: #{tpu_custom_call.1} parent=1 // pred_fallthru
      _
    // Predicated region
    $region26: #{tpu_custom_call.1} parent=1 // pred_check
      _
    $region27: #{tpu_custom_call.1} parent=1 // pred_check_branch
      %75 = sbr.rel (0) target = $region29
    $region28: #{tpu_custom_call.1} parent=1 // pred_region
      %77 = dma.done [#allocation6], 4096
    $region29: #{tpu_custom_call.1} parent=1 // pred_fallthru
      _
    // Predicated region
    $region30: #{tpu_custom_call.1} parent=1 // pred_check
      _
    $region31: #{tpu_custom_call.1} parent=1 // pred_check_branch
      %79 = sbr.rel (0) target = $region33
    $region32: #{tpu_custom_call.1} parent=1 // pred_region
      %81 = dma.done [#allocation6], 32
    $region33: #{tpu_custom_call.1} parent=1 // pred_fallthru
      _
    // Predicated region
    $region34: #{tpu_custom_call.1} parent=1 // pred_check
      _
    $region35: #{tpu_custom_call.1} parent=1 // pred_check_branch
      %83 = sbr.rel (0) target = $region37
    $region36: #{tpu_custom_call.1} parent=1 // pred_region
      %85 = dma.done [#allocation9], 4096
    $region37: #{tpu_custom_call.1} parent=1 // pred_fallthru
      _
    %v86 = vld [vmem:[#allocation2] sm:$0xff]
    %v87 = vld [vmem:[%s4] sm:$0x1]
    %v89 = vperm.slane %v87, 0
    %v91 = vsub.f32 %v86, %v89
    %v92 = vld [vmem:[#allocation5] sm:$0xff]
    %v93 = vld [vmem:[#allocation5 + $0x8] sm:$0xff]
    %v94 = vld [vmem:[#allocation5 + $0x10] sm:$0xff]
    %v95 = vld [vmem:[#allocation5 + $0x18] sm:$0xff]
    %v96 = vld [vmem:[#allocation5 + $0x20] sm:$0xff]
    %v97 = vld [vmem:[#allocation5 + $0x28] sm:$0xff]
    %v98 = vld [vmem:[#allocation5 + $0x30] sm:$0xff]
    %v99 = vld [vmem:[#allocation5 + $0x38] sm:$0xff]
    %v100 = vld [vmem:[#allocation5 + $0x40] sm:$0xff]
    %v101 = vld [vmem:[#allocation5 + $0x48] sm:$0xff]
    %v102 = vld [vmem:[#allocation5 + $0x50] sm:$0xff]
    %v103 = vld [vmem:[#allocation5 + $0x58] sm:$0xff]
    %v104 = vld [vmem:[#allocation5 + $0x60] sm:$0xff]
    %v105 = vld [vmem:[#allocation5 + $0x68] sm:$0xff]
    %v106 = vld [vmem:[#allocation5 + $0x70] sm:$0xff]
    %v107 = vld [vmem:[#allocation5 + $0x78] sm:$0xff]
    %v108 = vld [vmem:[#allocation5 + $0x80] sm:$0xff]
    %v109 = vld [vmem:[#allocation5 + $0x88] sm:$0xff]
    %v110 = vld [vmem:[#allocation5 + $0x90] sm:$0xff]
    %v111 = vld [vmem:[#allocation5 + $0x98] sm:$0xff]
    %v112 = vld [vmem:[#allocation5 + $0xa0] sm:$0xff]
    %v113 = vld [vmem:[#allocation5 + $0xa8] sm:$0xff]
    %v114 = vld [vmem:[#allocation5 + $0xb0] sm:$0xff]
    %v115 = vld [vmem:[#allocation5 + $0xb8] sm:$0xff]
    %v116 = vld [vmem:[#allocation5 + $0xc0] sm:$0xff]
    %v117 = vld [vmem:[#allocation5 + $0xc8] sm:$0xff]
    %v118 = vld [vmem:[#allocation5 + $0xd0] sm:$0xff]
    %v119 = vld [vmem:[#allocation5 + $0xd8] sm:$0xff]
    %v120 = vld [vmem:[#allocation5 + $0xe0] sm:$0xff]
    %v121 = vld [vmem:[#allocation5 + $0xe8] sm:$0xff]
    %v122 = vld [vmem:[#allocation5 + $0xf0] sm:$0xff]
    %v123 = vld [vmem:[#allocation5 + $0xf8] sm:$0xff]
    %v124 = vld [vmem:[#allocation7] sm:$0x3]
    %v126 = vperm.slane %v124, 0
    %v127 = vperm.slane %v124, 1
    %130 = vmatpush.msra.mxu0 %v122
    %131 = vmatpush.msra.mxu0 %v120
    %132 = vmatpush.msra.mxu0 %v118
    %133 = vmatpush.msra.mxu0 %v116
    %134 = vmatpush.msra.mxu0 %v114
    %135 = vmatpush.msra.mxu0 %v112
    %136 = vmatpush.msra.mxu0 %v110
    %137 = vmatpush.msra.mxu0 %v108
    %138 = vmatpush.msra.mxu0 %v106
    %139 = vmatpush.msra.mxu0 %v104
    %140 = vmatpush.msra.mxu0 %v102
    %141 = vmatpush.msra.mxu0 %v100
    %142 = vmatpush.msra.mxu0 %v98
    %143 = vmatpush.msra.mxu0 %v96
    %144 = vmatpush.msra.mxu0 %v94
    %145 = vmatpush.msra.mxu0 %v92
    %146 = vmatmul.f32.gmra.mxu0 %v91
    %v147 = vpop.f32.mrf.mxu0
    %v148 = vadd.f32 %v126, %v147
    %149 = vdwg.mxu0
    %150 = vmatpush.msra.mxu0 %v123
    %151 = vmatpush.msra.mxu0 %v121
    %152 = vmatpush.msra.mxu0 %v119
    %153 = vmatpush.msra.mxu0 %v117
    %154 = vmatpush.msra.mxu0 %v115
    %155 = vmatpush.msra.mxu0 %v113
    %156 = vmatpush.msra.mxu0 %v111
    %157 = vmatpush.msra.mxu0 %v109
    %158 = vmatpush.msra.mxu0 %v107
    %159 = vmatpush.msra.mxu0 %v105
    %160 = vmatpush.msra.mxu0 %v103
    %161 = vmatpush.msra.mxu0 %v101
    %162 = vmatpush.msra.mxu0 %v99
    %163 = vmatpush.msra.mxu0 %v97
    %164 = vmatpush.msra.mxu0 %v95
    %165 = vmatpush.msra.mxu0 %v93
    %166 = vmatmul.f32.gmra.mxu0 %v91
    %v167 = vpop.f32.mrf.mxu0
    %v168 = vadd.f32 %v127, %v167
    %169 = vdwg.mxu0
    %v170 = vmax.f32 %v148, 0.0
    %v171 = vmax.f32 %v168, 0.0
    %172 = vst [vmem:[#allocation11] sm:$0xff] %v170
    %173 = vst [vmem:[#allocation11 + $0x8] sm:$0xff] %v171
    %v174 = vld [vmem:[#allocation8] sm:$0xff]
    %v175 = vld [vmem:[#allocation8 + $0x8] sm:$0xff]
    %v176 = vld [vmem:[#allocation8 + $0x10] sm:$0xff]
    %v177 = vld [vmem:[#allocation8 + $0x18] sm:$0xff]
    %v178 = vld [vmem:[#allocation8 + $0x20] sm:$0xff]
    %v179 = vld [vmem:[#allocation8 + $0x28] sm:$0xff]
    %v180 = vld [vmem:[#allocation8 + $0x30] sm:$0xff]
    %v181 = vld [vmem:[#allocation8 + $0x38] sm:$0xff]
    %v182 = vld [vmem:[#allocation8 + $0x40] sm:$0xff]
    %v183 = vld [vmem:[#allocation8 + $0x48] sm:$0xff]
    %v184 = vld [vmem:[#allocation8 + $0x50] sm:$0xff]
    %v185 = vld [vmem:[#allocation8 + $0x58] sm:$0xff]
    %v186 = vld [vmem:[#allocation8 + $0x60] sm:$0xff]
    %v187 = vld [vmem:[#allocation8 + $0x68] sm:$0xff]
    %v188 = vld [vmem:[#allocation8 + $0x70] sm:$0xff]
    %v189 = vld [vmem:[#allocation8 + $0x78] sm:$0xff]
    %v190 = vld [vmem:[#allocation8 + $0x80] sm:$0xff]
    %v191 = vld [vmem:[#allocation8 + $0x88] sm:$0xff]
    %v192 = vld [vmem:[#allocation8 + $0x90] sm:$0xff]
    %v193 = vld [vmem:[#allocation8 + $0x98] sm:$0xff]
    %v194 = vld [vmem:[#allocation8 + $0xa0] sm:$0xff]
    %v195 = vld [vmem:[#allocation8 + $0xa8] sm:$0xff]
    %v196 = vld [vmem:[#allocation8 + $0xb0] sm:$0xff]
    %v197 = vld [vmem:[#allocation8 + $0xb8] sm:$0xff]
    %v198 = vld [vmem:[#allocation8 + $0xc0] sm:$0xff]
    %v199 = vld [vmem:[#allocation8 + $0xc8] sm:$0xff]
    %v200 = vld [vmem:[#allocation8 + $0xd0] sm:$0xff]
    %v201 = vld [vmem:[#allocation8 + $0xd8] sm:$0xff]
    %v202 = vld [vmem:[#allocation8 + $0xe0] sm:$0xff]
    %v203 = vld [vmem:[#allocation8 + $0xe8] sm:$0xff]
    %v204 = vld [vmem:[#allocation8 + $0xf0] sm:$0xff]
    %v205 = vld [vmem:[#allocation8 + $0xf8] sm:$0xff]
    %206 = vmatpush.msra.mxu0 %v189
    %207 = vmatpush.msra.mxu0 %v188
    %208 = vmatpush.msra.mxu0 %v187
    %209 = vmatpush.msra.mxu0 %v186
    %210 = vmatpush.msra.mxu0 %v185
    %211 = vmatpush.msra.mxu0 %v184
    %212 = vmatpush.msra.mxu0 %v183
    %213 = vmatpush.msra.mxu0 %v182
    %214 = vmatpush.msra.mxu0 %v181
    %215 = vmatpush.msra.mxu0 %v180
    %216 = vmatpush.msra.mxu0 %v179
    %217 = vmatpush.msra.mxu0 %v178
    %218 = vmatpush.msra.mxu0 %v177
    %219 = vmatpush.msra.mxu0 %v176
    %220 = vmatpush.msra.mxu0 %v175
    %221 = vmatpush.msra.mxu0 %v174
    %222 = vmatmul.f32.gmra.mxu0 %v170
    %v223 = vpop.f32.mrf.mxu0
    %v224 = vadd.f32 %v89, %v223
    %225 = vdwg.mxu0
    %226 = vmatpush.msra.mxu0 %v205
    %227 = vmatpush.msra.mxu0 %v204
    %228 = vmatpush.msra.mxu0 %v203
    %229 = vmatpush.msra.mxu0 %v202
    %230 = vmatpush.msra.mxu0 %v201
    %231 = vmatpush.msra.mxu0 %v200
    %232 = vmatpush.msra.mxu0 %v199
    %233 = vmatpush.msra.mxu0 %v198
    %234 = vmatpush.msra.mxu0 %v197
    %235 = vmatpush.msra.mxu0 %v196
    %236 = vmatpush.msra.mxu0 %v195
    %237 = vmatpush.msra.mxu0 %v194
    %238 = vmatpush.msra.mxu0 %v193
    %239 = vmatpush.msra.mxu0 %v192
    %240 = vmatpush.msra.mxu0 %v191
    %241 = vmatpush.msra.mxu0 %v190
    %242 = vmatmul.f32.gmra.mxu0 %v171
    %v243 = vpop.f32.mrf.mxu0
    %v244 = vadd.f32 %v224, %v243
    %245 = vdwg.mxu0
    %246 = vst [vmem:[#allocation10] sm:$0xff] %v244
    %v247 = vsub.f32 %v244, %v86
    %v248 = vmul.f32 %v247, %v247
    %249 = vadd.xlane.f32.xlu0 %v248
    %v250 = vpop.xlane.xlu0 %249
    %v251 = vrot.slane %v250, 4
    %v252 = vadd.f32 %v250, %v251
    %v253 = vrot.slane %v252, 2
    %v254 = vadd.f32 %v252, %v253
    %v255 = vrot.slane %v254, 1
    %v256 = vadd.f32 %v254, %v255
    %s257 = vtos %v256
    %v258 = vstv %s257
    %259 = vst [vmem:[#allocation13] sm:$0xff] %v258
    %v260 = vand.u32 2147483647, %v170
    %v261 = vand.u32 2147483647, %v171
    %v262 = vadd.f32 %v260, %v261
    %263 = vadd.xlane.f32.xlu0 %v262
    %v264 = vpop.xlane.xlu0 %263
    %v265 = vrot.slane %v264, 4
    %v266 = vadd.f32 %v264, %v265
    %v267 = vrot.slane %v266, 2
    %v268 = vadd.f32 %v266, %v267
    %v269 = vrot.slane %v268, 1
    %v270 = vadd.f32 %v268, %v269
    %s271 = vtos %v270
    %v272 = vstv %s271
    %273 = vst [vmem:[#allocation14] sm:$0xff] %v272
    // Predicated region
    $region38: #{tpu_custom_call.1} parent=1 // pred_check
      _
    $region39: #{tpu_custom_call.1} parent=1 // pred_check_branch
      %275 = sbr.rel (0) target = $region41
    $region40: #{tpu_custom_call.1} parent=1 // pred_region
      %277 = vsyncadd [#allocation4], 0
      %s279 = sshll.u32 [#allocation10], 4
      %s280 = int_to_ptr.vmem [resolvable:$true] %s279
      %s281 = sshll.u32 %s5, 4
      %s282 = int_to_ptr.hbm [resolvable:$true] %s281
      %284 = dma.vmem_to_hbm [thread:$0]  %s280, 128, %s282, [#allocation4]
    $region41: #{tpu_custom_call.1} parent=1 // pred_fallthru
      _
    // Predicated region
    $region42: #{tpu_custom_call.1} parent=1 // pred_check
      _
    $region43: #{tpu_custom_call.1} parent=1 // pred_check_branch
      %286 = sbr.rel (0) target = $region45
    $region44: #{tpu_custom_call.1} parent=1 // pred_region
      %288 = vsyncadd [#allocation12], 0
      %s290 = sshll.u32 [#allocation11], 4
      %s291 = int_to_ptr.vmem [resolvable:$true] %s290
      %s292 = sshll.u32 %s6, 4
      %s293 = int_to_ptr.hbm [resolvable:$true] %s292
      %295 = dma.vmem_to_hbm [thread:$0]  %s291, 256, %s293, [#allocation12]
    $region45: #{tpu_custom_call.1} parent=1 // pred_fallthru
      _
    // Predicated region
    $region46: #{tpu_custom_call.1} parent=1 // pred_check
      _
    $region47: #{tpu_custom_call.1} parent=1 // pred_check_branch
      %297 = sbr.rel (0) target = $region49
    $region48: #{tpu_custom_call.1} parent=1 // pred_region
      %299 = vsyncadd [#allocation12], 0
      %s301 = sshll.u32 [#allocation13], 4
      %s302 = int_to_ptr.vmem [resolvable:$true] %s301
      %s303 = sshll.u32 %s7, 4
      %s304 = int_to_ptr.hbm [resolvable:$true] %s303
      %306 = dma.vmem_to_hbm [thread:$0]  %s302, 128, %s304, [#allocation12]
    $region49: #{tpu_custom_call.1} parent=1 // pred_fallthru
      _
    // Predicated region
    $region50: #{tpu_custom_call.1} parent=1 // pred_check
      _
    $region51: #{tpu_custom_call.1} parent=1 // pred_check_branch
      %308 = sbr.rel (0) target = $region53
    $region52: #{tpu_custom_call.1} parent=1 // pred_region
      %310 = vsyncadd [#allocation15], 0
      %s312 = sshll.u32 [#allocation14], 4
      %s313 = int_to_ptr.vmem [resolvable:$true] %s312
      %s314 = sshll.u32 %s8, 4
      %s315 = int_to_ptr.hbm [resolvable:$true] %s314
      %317 = dma.vmem_to_hbm [thread:$0]  %s313, 128, %s315, [#allocation15]
    $region53: #{tpu_custom_call.1} parent=1 // pred_fallthru
      _
    // Predicated region
    $region54: #{tpu_custom_call.1} parent=1 // pred_check
      _
    $region55: #{tpu_custom_call.1} parent=1 // pred_check_branch
      %319 = sbr.rel (0) target = $region57
    $region56: #{tpu_custom_call.1} parent=1 // pred_region
      %321 = dma.done [#allocation4], 128
    $region57: #{tpu_custom_call.1} parent=1 // pred_fallthru
      _
    // Predicated region
    $region58: #{tpu_custom_call.1} parent=1 // pred_check
      _
    $region59: #{tpu_custom_call.1} parent=1 // pred_check_branch
      %323 = sbr.rel (0) target = $region61
    $region60: #{tpu_custom_call.1} parent=1 // pred_region
      %325 = dma.done [#allocation12], 256
    $region61: #{tpu_custom_call.1} parent=1 // pred_fallthru
      _
    // Predicated region
    $region62: #{tpu_custom_call.1} parent=1 // pred_check
      _
    $region63: #{tpu_custom_call.1} parent=1 // pred_check_branch
      %327 = sbr.rel (0) target = $region65
    $region64: #{tpu_custom_call.1} parent=1 // pred_region
      %329 = dma.done [#allocation12], 128
    $region65: #{tpu_custom_call.1} parent=1 // pred_fallthru
      _
    // Predicated region
    $region66: #{tpu_custom_call.1} parent=1 // pred_check
      _
    $region67: #{tpu_custom_call.1} parent=1 // pred_check_branch
      %331 = sbr.rel (0) target = $region69
    $region68: #{tpu_custom_call.1} parent=1 // pred_region
      %333 = dma.done [#allocation15], 128
    $region69: #{tpu_custom_call.1} parent=1 // pred_fallthru
      _
    %334 = vsyncpa [#allocation3], 1
    %335 = vsyncpa [#allocation6], 1
    %336 = vsyncpa [#allocation9], 1
    %337 = vsyncpa [#allocation4], 1
    %338 = vsyncpa [#allocation12], 1
    %339 = vsyncpa [#allocation15], 1

</llo_original>
